<compile_context>
chip_gen: v5e
topology: v5e:2x2
jax: 0.10.0
libtpu: 0.0.40
codegen_flags: <defaults>
</compile_context>

<pallas_src>
import math

import jax
import jax.numpy as jnp
from jax.experimental import pallas as pl
from jax.experimental.pallas import tpu as pltpu

_LANES = 128
_SUBLANES = 8
_TARGET_ROWS = 2048                     # rows of 128 lanes per block ~= 1 MiB for f32
_PE_RESIDENT_BYTES = 2 * 1024 * 1024    # keep pe fully resident in VMEM below this size
_MIN_PALLAS_ELEMS = 32 * 1024           # below this, fused XLA add beats a standalone kernel


def _round_up(a: int, b: int) -> int:
    return ((a + b - 1) // b) * b


def _build_pe(max_len: int, d_model: int, dtype=jnp.float32) -> jnp.ndarray:
    """Sinusoidal positional-encoding table, matching the PyTorch __init__.
    Shape: (max_len, d_model).  Handles odd d_model (unlike the classic snippet)."""
    position = jnp.arange(0, max_len, dtype=jnp.float32)[:, None]              # (L, 1)
    div_term = jnp.exp(
        jnp.arange(0, d_model, 2, dtype=jnp.float32)
        * -(math.log(10000.0) / d_model)
    )                                                                           # (ceil(D/2),)
    angles = position * div_term                                                # (L, ceil(D/2))
    pe = jnp.zeros((max_len, d_model), dtype=jnp.float32)
    pe = pe.at[:, 0::2].set(jnp.sin(angles))
    pe = pe.at[:, 1::2].set(jnp.cos(angles[:, : d_model // 2]))
    return pe.astype(dtype)


def _add_kernel_resident_pe(x_ref, pe_ref, o_ref):
    # pe_ref holds the full (R, 128) folded table, resident in VMEM (block index constant).
    # Slice this row tile's rows; start is a multiple of 8 (TR is a multiple of 8).
    tr = x_ref.shape[1]
    start = pl.multiple_of(pl.program_id(0) * tr, _SUBLANES)
    pe = pe_ref[pl.ds(start, tr), :]
    o_ref[...] = x_ref[...] + pe[None, :, :]


def _add_kernel_tiled_pe(x_ref, pe_ref, o_ref):
    # pe tile matches x's row tile; batch is the innermost grid axis so the pe block index
    # is constant across batch steps and stays resident without re-DMA.
    o_ref[...] = x_ref[...] + pe_ref[...][None, :, :]


def positional_encoding_forward(
    x: jnp.ndarray, pe: jnp.ndarray, *, min_pallas_elems: int = _MIN_PALLAS_ELEMS
) -> jnp.ndarray:
    """x: (B, S, D); pe: (max_len, D).  Returns x + pe[:S] (dropout = identity, eval mode)."""
    B, S, D = x.shape
    max_len = pe.shape[0]
    if S > max_len:
        raise ValueError(f"sequence length {S} exceeds positional-encoding max_len {max_len}")
    pe_slice = pe[:S, :].astype(x.dtype)

    # Tiny inputs: let XLA fuse the add; a standalone kernel's fixed overhead dwarfs the work.
    if B * S * D < min_pallas_elems:
        return x + pe_slice[None, :, :]

    P0 = S * D
    R0 = pl.cdiv(P0, _LANES)

    # ---- Row tiling: TR rows of 128 lanes, TR a multiple of 8. ----
    n_rt = max(1, pl.cdiv(R0, _TARGET_ROWS))
    TR = _round_up(pl.cdiv(R0, n_rt), _SUBLANES)

    # ---- Batch tiling: pack several batches per block when one row tile covers S*D. ----
    if n_rt == 1:
        TB = max(1, min(B, _TARGET_ROWS // TR))
    else:
        TB = 1
    n_bt = pl.cdiv(B, TB)

    # ---- Ensure >= 2 grid steps when possible so both v7x TensorCores get work. ----
    if n_rt * n_bt == 1:
        if TB > 1:
            TB = pl.cdiv(TB, 2)
            n_bt = pl.cdiv(B, TB)
        elif TR >= 2 * _SUBLANES:
            n_rt = 2
            TR = _round_up(pl.cdiv(R0, 2), _SUBLANES)

    R = n_rt * TR
    P = R * _LANES

    # ---- Flatten + zero-pad so TR divides R exactly (no ragged / masked tiles). ----
    x2 = x.reshape(B, P0)
    pe1 = pe_slice.reshape(P0)
    if P > P0:
        x2 = jnp.pad(x2, ((0, 0), (0, P - P0)))
        pe1 = jnp.pad(pe1, (0, P - P0))
    x3 = x2.reshape(B, R, _LANES)
    pe2 = pe1.reshape(R, _LANES)

    itemsize = jnp.dtype(x.dtype).itemsize
    pe_resident = R * _LANES * itemsize <= _PE_RESIDENT_BYTES

    if pe_resident:
        kernel = _add_kernel_resident_pe
        pe_spec = pl.BlockSpec((R, _LANES), lambda r, b: (0, 0))      # whole table, one DMA
    else:
        kernel = _add_kernel_tiled_pe
        pe_spec = pl.BlockSpec((TR, _LANES), lambda r, b: (r, 0))     # one DMA per row tile

    out3 = pl.pallas_call(
        kernel,
        out_shape=jax.ShapeDtypeStruct((B, R, _LANES), x.dtype),
        grid_spec=pltpu.PrefetchScalarGridSpec(
            num_scalar_prefetch=0,
            # Batch innermost: pe's block index is constant across it -> stays resident.
            grid=(n_rt, n_bt),
            in_specs=[
                pl.BlockSpec((TB, TR, _LANES), lambda r, b: (b, r, 0)),
                pe_spec,
            ],
            out_specs=pl.BlockSpec((TB, TR, _LANES), lambda r, b: (b, r, 0)),
        ),
        compiler_params=pltpu.CompilerParams(
            dimension_semantics=("parallel", "parallel"),
        ),
    )(x3, pe2)

    return out3.reshape(B, P)[:, :P0].reshape(B, S, D)


if __name__ == "__main__":
    # Small shapes consistent with the module: batch=2, seq=8, d_model=32.
    B, S, D = 2, 8, 32
    MAX_LEN = 5000
    DROPOUT_P = 0.1  # unused at inference (dropout == identity)

    key = jax.random.PRNGKey(0)
    x = jax.random.normal(key, (B, S, D), dtype=jnp.float32)
    pe = _build_pe(MAX_LEN, D, dtype=jnp.float32)

    # Force the Pallas path even at this tiny module-default shape (normally it would
    # dispatch to a fused XLA add below the size threshold).
    out = jax.block_until_ready(positional_encoding_forward(x, pe, min_pallas_elems=0))
    ref = x + pe[None, :S, :]
    assert out.shape == (B, S, D)
    assert jnp.allclose(out, ref, atol=1e-6, rtol=1e-6)

    # Also exercise the resident-pe / multi-batch-block path at a slightly larger shape.
    B2, S2 = 4, 512
    x_big = jax.random.normal(key, (B2, S2, D), dtype=jnp.float32)
    out_big = jax.block_until_ready(positional_encoding_forward(x_big, pe, min_pallas_elems=0))
    ref_big = x_big + pe[None, :S2, :]
    assert jnp.allclose(out_big, ref_big, atol=1e-6, rtol=1e-6)

    print("KERNEL_OK")
</pallas_src>

<mosaic_0001>
module attributes {stable_mosaic.version = 11 : i64} {
  func.func @_add_kernel_resident_pe(%arg0: i32, %arg1: i32, %arg2: memref<1x8x128xf32, #tpu.memory_space<vmem>>, %arg3: memref<8x128xf32, #tpu.memory_space<vmem>>, %arg4: memref<1x8x128xf32, #tpu.memory_space<vmem>>) attributes {dimension_semantics = [#tpu.dimension_semantics<parallel>, #tpu.dimension_semantics<parallel>], iteration_bounds = array<i64: 1, 2>, scalar_prefetch = 0 : i64, scratch_operands = 0 : i64, tpu.core_type = #tpu.core_type<tc>, window_params = [{transform_indices = @transform_0, window_bounds = array<i64: 1, 8, 128>}, {pipeline_mode = #tpu.pipeline_mode<synchronous>, transform_indices = @transform_1, window_bounds = array<i64: 8, 128>}, {transform_indices = @transform_2, window_bounds = array<i64: 1, 8, 128>}]} {
    %c8_i32 = arith.constant 8 : i32
    %0 = arith.muli %arg0, %c8_i32 : i32
    %1 = tpu.assume_multiple %0, 8 : i32
    %2 = arith.index_cast %1 : i32 to index
    %c0 = arith.constant 0 : index
    %3 = vector.load %arg3[%2, %c0] : memref<8x128xf32, #tpu.memory_space<vmem>>, vector<8x128xf32>
    %c0_0 = arith.constant 0 : index
    %c0_1 = arith.constant 0 : index
    %c0_2 = arith.constant 0 : index
    %4 = vector.load %arg2[%c0_0, %c0_1, %c0_2] : memref<1x8x128xf32, #tpu.memory_space<vmem>>, vector<1x8x128xf32>
    %5 = vector.shape_cast %3 : vector<8x128xf32> to vector<1x8x128xf32>
    %6 = arith.addf %4, %5 : vector<1x8x128xf32>
    %c0_3 = arith.constant 0 : index
    %c0_4 = arith.constant 0 : index
    %c0_5 = arith.constant 0 : index
    %7 = vector.load %arg4[%c0_3, %c0_4, %c0_5] : memref<1x8x128xf32, #tpu.memory_space<vmem>>, vector<1x8x128xf32>
    tpu.vector_store %arg4[%c0_3, %c0_4, %c0_5], %6 {strides = array<i32>} : memref<1x8x128xf32, #tpu.memory_space<vmem>>, vector<1x8x128xf32>,
    return
  }
  func.func @transform_0(%arg0: i32, %arg1: i32) -> (i32, i32, i32) {
    %c0_i32 = arith.constant 0 : i32
    %c0_i32_0 = arith.constant 0 : i32
    return %arg1, %arg0, %c0_i32 : i32, i32, i32
  }
  func.func @transform_1(%arg0: i32, %arg1: i32) -> (i32, i32) {
    %c0_i32 = arith.constant 0 : i32
    %c0_i32_0 = arith.constant 0 : i32
    %c0_i32_1 = arith.constant 0 : i32
    return %c0_i32, %c0_i32_0 : i32, i32
  }
  func.func @transform_2(%arg0: i32, %arg1: i32) -> (i32, i32, i32) {
    %c0_i32 = arith.constant 0 : i32
    %c0_i32_0 = arith.constant 0 : i32
    return %arg1, %arg0, %c0_i32 : i32, i32, i32
  }
}

</mosaic_0001>

<llo_original>
// kernel: tpu_custom_call.1
$region0: #{tpu_custom_call.1}
  #allocation0 [shape = 'u32[]', space=smem, size = 0x4, offset = 0x4, fixed_abs, tag = 'smem constant byte address 0x4 - core index']
  #allocation1 [shape = 'u32[72,128]{1,0:T(1,128)}', space=vmem, size = 0x9000, scoped, tag = 'internal scratch']
  %s0 = inlined_call_operand.hbm [shape: f32[2,8,128], index: 0, kind: input, shape index: {}]
  %s1 = inlined_call_operand.hbm [shape: f32[8,128], index: 1, kind: input, shape index: {}]
  %s2 = inlined_call_operand.hbm [shape: f32[2,8,128], index: 2, kind: output, shape index: {}]
  %s3 = sld [smem:[#allocation0]]
  $region49: #{tpu_custom_call.1} parent=0
    _
  %s5 = ssub.s32 1, %s3
  %s6 = scalar_select 0, %s5, %s3
  $region1: #{tpu_custom_call.1} parent=0
    #allocation2 [shape = 'u8[8192]{0}', space=vmem, size = 0x2000, scoped, tag = 'input window, operand 0']
    #allocation3 [shape = 's32[2]{0}', space=sflag, size = 0x8, scoped, tag = 'scoped memory for tpu_custom_call.1']
    #allocation4 [shape = 's32[2]{0}', space=sflag, size = 0x8, scoped, tag = 'scoped memory for tpu_custom_call.1']
    #allocation5 [shape = 'u8[4096]{0}', space=vmem, size = 0x1000, scoped, tag = 'input window, operand 1, single buffered']
    #allocation6 [shape = 's32[1]{0}', space=sflag, size = 0x4, scoped, tag = 'scoped memory for tpu_custom_call.1']
    #allocation7 [shape = 'u8[8192]{0}', space=vmem, size = 0x2000, scoped, tag = 'output window, operand 0']
    %7 = vsyncpa [#allocation3], 0
    %s8 = scalar_lea.sflag [#allocation3], 1
    %9 = vsyncpa %s8, 0
    %10 = vsyncpa [#allocation6], 0
    %11 = vsyncpa [#allocation4], 0
    %s12 = scalar_lea.sflag [#allocation4], 1
    %13 = vsyncpa %s12, 0
    loop: start=0, step=1, limit=4
    $region2: #{tpu_custom_call.1} parent=1 // loop_pre_header
      _
    $region3: #{tpu_custom_call.1} parent=1 // loop_header
      %s15 = sphi 0, %s19
      %p16 = scmp.ge.s32.totalorder %s15, 4
      %s22 = sphi 0, %s34
      %s23 = sphi 0, %s30
      %s24 = sphi 0, %s22
      %s25 = sphi 0, %s23
      %s26 = sphi 0, %s24
      %s27 = sphi 0, %s25
      %s39 = sphi 0, %s41
      %s42 = sphi 0, %s39
      %s43 = sphi 0, %s42
      %s59 = sphi 0, %s43
      %s63 = sphi 0, %s63
      %s65 = sphi 0, %s63
      %s66 = sphi 0, %s65
      %s80 = sphi 0, %s66
      %s88 = sphi 0, %s90
      %s91 = sphi 0, %s88
      %s92 = sphi 0, %s91
      %s108 = sphi 0, %s92
    $region4: #{tpu_custom_call.1} parent=1 // loop_header_branch
      %18 = sbr.rel (%p16) target = $region8
    $region5: #{tpu_custom_call.1} parent=1 // loop_body
      %s20 = ssub.s32 %s15, 1
      %s21 = ssub.s32 %s15, 2
      %s28 = sadd.s32 1, %s23
      %p29 = scmp.ge.s32.totalorder %s28, 2
      %s30 = scalar_select %p29, 0, %s28
      %s31 = sadd.s32 1, %s22
      %s32 = scalar_select %p29, %s31, %s22
      %p33 = scmp.ge.s32.totalorder %s32, 1
      %s34 = scalar_select %p33, 0, %s32
      %s35 = ssub.s32 %s23, %s30
      %s36 = ssub.s32 %s22, %s34
      %s37 = sor.u32 %s35, %s36
      %p38 = scmp.eq.s32.totalorder %s37, 0
      %s40 = sadd.s32 %s39, 1
      %s41 = scalar_select %p38, %s39, %s40
      %p44 = pneg %p38
      %p45 = scmp.eq.s32.totalorder %s15, 1
      %p46 = por %p44, %p45
      %p47 = scmp.ne.s32.totalorder %s39, %s42
      %p48 = scmp.eq.s32.totalorder %s15, 0
      %p49 = por %p47, %p48
      %p50 = scmp.ne.s32.totalorder %s39, %s42
      %p51 = scmp.eq.s32.totalorder %s20, 1
      %p52 = por %p50, %p51
      %p53 = scmp.ne.s32.totalorder %s42, %s43
      %p54 = scmp.eq.s32.totalorder %s20, 0
      %p55 = por %p53, %p54
      %p56 = scmp.ne.s32.totalorder %s42, %s43
      %p57 = scmp.eq.s32.totalorder %s21, 1
      %p58 = por %p56, %p57
      %p60 = scmp.ne.s32.totalorder %s43, %s59
      %p61 = scmp.eq.s32.totalorder %s21, 0
      %p62 = por %p60, %p61
      %s64 = sadd.s32 %s63, 1
      %p67 = scmp.eq.s32.totalorder %s15, 1
      %p68 = scmp.ne.s32.totalorder %s63, %s65
      %p69 = scmp.eq.s32.totalorder %s15, 0
      %p70 = por %p68, %p69
      %p71 = scmp.ne.s32.totalorder %s63, %s65
      %p72 = scmp.eq.s32.totalorder %s20, 1
      %p73 = por %p71, %p72
      %p74 = scmp.ne.s32.totalorder %s65, %s66
      %p75 = scmp.eq.s32.totalorder %s20, 0
      %p76 = por %p74, %p75
      %p77 = scmp.ne.s32.totalorder %s65, %s66
      %p78 = scmp.eq.s32.totalorder %s21, 1
      %p79 = por %p77, %p78
      %p81 = scmp.ne.s32.totalorder %s66, %s80
      %p82 = scmp.eq.s32.totalorder %s21, 0
      %p83 = por %p81, %p82
      %s84 = ssub.s32 %s23, %s30
      %s85 = ssub.s32 %s22, %s34
      %s86 = sor.u32 %s84, %s85
      %p87 = scmp.eq.s32.totalorder %s86, 0
      %s89 = sadd.s32 %s88, 1
      %s90 = scalar_select %p87, %s88, %s89
      %p93 = pneg %p87
      %p94 = scmp.eq.s32.totalorder %s15, 1
      %p95 = por %p93, %p94
      %p96 = scmp.ne.s32.totalorder %s88, %s91
      %p97 = scmp.eq.s32.totalorder %s15, 0
      %p98 = por %p96, %p97
      %p99 = scmp.ne.s32.totalorder %s88, %s91
      %p100 = scmp.eq.s32.totalorder %s20, 1
      %p101 = por %p99, %p100
      %p102 = scmp.ne.s32.totalorder %s91, %s92
      %p103 = scmp.eq.s32.totalorder %s20, 0
      %p104 = por %p102, %p103
      %p105 = scmp.ne.s32.totalorder %s91, %s92
      %p106 = scmp.eq.s32.totalorder %s21, 1
      %p107 = por %p105, %p106
      %p109 = scmp.ne.s32.totalorder %s92, %s108
      %p110 = scmp.eq.s32.totalorder %s21, 0
      %p111 = por %p109, %p110
      %p112 = scmp.le.s32.totalorder 1, %s15
      %p113 = scmp.lt.s32.totalorder %s15, 3
      %p114 = pnand %p112, %p113
      %p115 = pneg %p114
      // Predicated region
      $region9: #{tpu_custom_call.1} parent=5 // pred_check
        _
      $region10: #{tpu_custom_call.1} parent=5 // pred_check_branch
        %117 = sbr.rel (%p114) target = $region12
      $region11: #{tpu_custom_call.1} parent=5 // pred_region
        %s118 = ssub.s32 %s15, 1
        // Predicated region
        $region13: #{tpu_custom_call.1} parent=11 // pred_check
          %p119 = pneg %p76
        $region14: #{tpu_custom_call.1} parent=11 // pred_check_branch
          %121 = sbr.rel (%p119) target = $region16
        $region15: #{tpu_custom_call.1} parent=11 // pred_region
          %123 = vsyncadd [#allocation6], 0
          %s125 = sshll.u32 %s1, 4
          %s126 = int_to_ptr.hbm [resolvable:$true] %s125
          %s127 = sshll.u32 [#allocation5], 4
          %s128 = int_to_ptr.vmem [resolvable:$true] %s127
          %130 = dma.hbm_to_vmem [thread:$0]  %s126, 128, %s128, [#allocation6]
        $region16: #{tpu_custom_call.1} parent=11 // pred_fallthru
          _
      $region12: #{tpu_custom_call.1} parent=5 // pred_fallthru
        _
      %p131 = scmp.lt.s32.totalorder %s15, 2
      // Predicated region
      $region17: #{tpu_custom_call.1} parent=5 // pred_check
        %p132 = pneg %p131
      $region18: #{tpu_custom_call.1} parent=5 // pred_check_branch
        %134 = sbr.rel (%p132) target = $region20
      $region19: #{tpu_custom_call.1} parent=5 // pred_region
        // Predicated region
        $region21: #{tpu_custom_call.1} parent=19 // pred_check
          %p135 = pneg %p49
        $region22: #{tpu_custom_call.1} parent=19 // pred_check_branch
          %137 = sbr.rel (%p135) target = $region24
        $region23: #{tpu_custom_call.1} parent=19 // pred_region
          %s138 = sand.u32 %s39, 1
          %s139 = scalar_lea.sflag [#allocation3], %s138
          %s140 = sand.u32 %s39, 1
          %s141 = smul.addr %s140, 8
          %s142 = scalar_lea.vmem [#allocation2], %s141
          %144 = vsyncadd %s139, 0
          %s145 = sadd.s32 %s22, %s23
          %s146 = smul.addr %s145, 8
          %s147 = scalar_lea.hbm %s0, %s146
          %s149 = sshll.u32 %s147, 4
          %s150 = int_to_ptr.hbm [resolvable:$true] %s149
          %s151 = sshll.u32 %s142, 4
          %s152 = int_to_ptr.vmem [resolvable:$true] %s151
          %154 = dma.hbm_to_vmem [thread:$0]  %s150, 128, %s152, %s139
        $region24: #{tpu_custom_call.1} parent=19 // pred_fallthru
          _
      $region20: #{tpu_custom_call.1} parent=5 // pred_fallthru
        _
      %p155 = scmp.le.s32.totalorder 1, %s15
      %p156 = scmp.lt.s32.totalorder %s15, 3
      %p157 = pnand %p155, %p156
      %p158 = pneg %p157
      // Predicated region
      $region25: #{tpu_custom_call.1} parent=5 // pred_check
        _
      $region26: #{tpu_custom_call.1} parent=5 // pred_check_branch
        %160 = sbr.rel (%p157) target = $region28
      $region27: #{tpu_custom_call.1} parent=5 // pred_region
        %s161 = ssub.s32 %s15, 1
        %s162 = sand.u32 %s42, 1
        %s163 = scalar_lea.sflag [#allocation3], %s162
        %s164 = sand.u32 %s42, 1
        %s165 = smul.addr %s164, 8
        %s166 = scalar_lea.vmem [#allocation2], %s165
        // Predicated region
        $region29: #{tpu_custom_call.1} parent=27 // pred_check
          %p167 = pneg %p55
        $region30: #{tpu_custom_call.1} parent=27 // pred_check_branch
          %169 = sbr.rel (%p167) target = $region32
        $region31: #{tpu_custom_call.1} parent=27 // pred_region
          %171 = dma.done %s163, 128
        $region32: #{tpu_custom_call.1} parent=27 // pred_fallthru
          _
        // Predicated region
        $region33: #{tpu_custom_call.1} parent=27 // pred_check
          %p172 = pneg %p76
        $region34: #{tpu_custom_call.1} parent=27 // pred_check_branch
          %174 = sbr.rel (%p172) target = $region36
        $region35: #{tpu_custom_call.1} parent=27 // pred_region
          %176 = dma.done [#allocation6], 128
        $region36: #{tpu_custom_call.1} parent=27 // pred_fallthru
          _
        %s177 = sand.u32 %s42, 1
        %s178 = scalar_lea.sflag [#allocation3], %s177
        %s179 = sand.u32 %s42, 1
        %s180 = smul.addr %s179, 8
        %s181 = scalar_lea.vmem [#allocation2], %s180
        %p182 = pneg %p55
        %p183 = pneg %p52
        %p184 = pneg %p76
        %p185 = pneg %p73
        %p186 = pneg %p104
        %p187 = pneg %p101
        %s188 = sand.u32 %s91, 1
        %s189 = scalar_lea.sflag [#allocation4], %s188
        %s190 = sand.u32 %s91, 1
        %s191 = smul.addr %s190, 8
        %s192 = scalar_lea.vmem [#allocation7], %s191
        %s193 = smul.u32 %s24, 8
        %s194 = scalar_lea.vmem [#allocation5], %s193
        %v195 = vld [vmem:[%s194] sm:$0xff]
        %v196 = vld [vmem:[%s166] sm:$0xff]
        %v197 = vadd.f32 %v196, %v195
        %198 = vst [vmem:[%s192] sm:$0xff] %v197
        %s199 = sand.u32 %s91, 1
        %s200 = scalar_lea.sflag [#allocation4], %s199
        %s201 = sand.u32 %s91, 1
        %s202 = smul.addr %s201, 8
        %s203 = scalar_lea.vmem [#allocation7], %s202
        // Predicated region
        $region37: #{tpu_custom_call.1} parent=27 // pred_check
          %p204 = pneg %p101
        $region38: #{tpu_custom_call.1} parent=27 // pred_check_branch
          %206 = sbr.rel (%p204) target = $region40
        $region39: #{tpu_custom_call.1} parent=27 // pred_region
          %208 = vsyncadd %s200, 0
          %s209 = sadd.s32 %s24, %s25
          %s210 = smul.addr %s209, 8
          %s211 = scalar_lea.hbm %s2, %s210
          %s213 = sshll.u32 %s203, 4
          %s214 = int_to_ptr.vmem [resolvable:$true] %s213
          %s215 = sshll.u32 %s211, 4
          %s216 = int_to_ptr.hbm [resolvable:$true] %s215
          %218 = dma.vmem_to_hbm [thread:$0]  %s214, 128, %s216, %s200
        $region40: #{tpu_custom_call.1} parent=27 // pred_fallthru
          _
      $region28: #{tpu_custom_call.1} parent=5 // pred_fallthru
        _
      %p219 = scmp.le.s32.totalorder 2, %s15
      // Predicated region
      $region41: #{tpu_custom_call.1} parent=5 // pred_check
        %p220 = pneg %p219
      $region42: #{tpu_custom_call.1} parent=5 // pred_check_branch
        %222 = sbr.rel (%p220) target = $region44
      $region43: #{tpu_custom_call.1} parent=5 // pred_region
        %s223 = ssub.s32 %s15, 2
        // Predicated region
        $region45: #{tpu_custom_call.1} parent=43 // pred_check
          %p224 = pneg %p107
        $region46: #{tpu_custom_call.1} parent=43 // pred_check_branch
          %226 = sbr.rel (%p224) target = $region48
        $region47: #{tpu_custom_call.1} parent=43 // pred_region
          %s227 = sand.u32 %s92, 1
          %s228 = scalar_lea.sflag [#allocation4], %s227
          %s229 = sand.u32 %s92, 1
          %s230 = smul.addr %s229, 8
          %s231 = scalar_lea.vmem [#allocation7], %s230
          %233 = dma.done %s228, 128
        $region48: #{tpu_custom_call.1} parent=43 // pred_fallthru
          _
      $region44: #{tpu_custom_call.1} parent=5 // pred_fallthru
        _
    $region6: #{tpu_custom_call.1} parent=1 // loop_footer
      %s19 = sadd.s32 1, %s15
    $region7: #{tpu_custom_call.1} parent=1 // loop_footer_branch
      %14 = sbr.rel target = $region3
    $region8: #{tpu_custom_call.1} parent=1 // loop_exit
      _
    %234 = vsyncpa [#allocation3], 1
    %s235 = scalar_lea.sflag [#allocation3], 1
    %236 = vsyncpa %s235, 1
    %237 = vsyncpa [#allocation6], 1
    %238 = vsyncpa [#allocation4], 1
    %s239 = scalar_lea.sflag [#allocation4], 1
    %240 = vsyncpa %s239, 1

</llo_original>
